<compile_context>
chip_gen: v7x
topology: tpu7x:2x2x1
jax: 0.10.0
libtpu: 0.0.40
codegen_flags: <defaults>
</compile_context>

<pallas_src>
import jax
import jax.numpy as jnp
from jax.experimental import pallas as pl
from jax.experimental.pallas import tpu as pltpu


def _focal_loss_kernel(pred_ref, gt_ref, alpha_ref, pos_ref, neg_ref, npos_ref):
    j = pl.program_id(1)

    @pl.when(j == 0)
    def _init():
        pos_ref[...] = jnp.zeros_like(pos_ref)
        neg_ref[...] = jnp.zeros_like(neg_ref)
        npos_ref[...] = jnp.zeros_like(npos_ref)

    pred = pred_ref[...].astype(jnp.float32)      # (TR, TC)
    gt = gt_ref[...].astype(jnp.float32)          # (TR, TC)
    alpha = alpha_ref[...].astype(jnp.float32)    # (TR, 1) -> lane broadcast

    is_pos = gt == 1.0
    pos_inds = is_pos.astype(jnp.float32)

    one_m_gt = 1.0 - gt
    sq = one_m_gt * one_m_gt
    neg_w = sq * sq                                # (1 - gt)^4  (2 muls)

    one_m_pred = 1.0 - pred
    # Single log per element: positives need log(pred), negatives log(1-pred).
    lg = jnp.log(jnp.where(is_pos, pred, one_m_pred))

    pos_term = lg * (one_m_pred * one_m_pred)
    # select-before-multiply kills the 0*(-inf)=NaN hazard; alpha folded per row
    pos_contrib = jnp.where(is_pos, pos_term, 0.0) * alpha
    neg_term = (lg * (pred * pred)) * neg_w
    neg_contrib = jnp.where(gt < 1.0, neg_term, 0.0)

    def collapse_to_vreg(x):
        # (TR, TC) -> (8, 128) using layout-aligned static slices (VPU adds only,
        # no reshapes, no XLU).
        tr, tc = x.shape
        r = x[0:8, :]
        for a in range(1, tr // 8):
            r = r + x[a * 8:(a + 1) * 8, :]
        s = r[:, 0:128]
        for m in range(1, tc // 128):
            s = s + r[:, m * 128:(m + 1) * 128]
        return s

    pos_ref[...] += collapse_to_vreg(pos_contrib)[None]
    neg_ref[...] += collapse_to_vreg(neg_contrib)[None]
    npos_ref[...] += collapse_to_vreg(pos_inds)[None]


def _round_up(x, m):
    return ((x + m - 1) // m) * m


def _alpha_vector(alpha, num_classes):
    """Mirrors the alpha normalization logic of the PyTorch _neg_loss."""
    if alpha is None:
        return jnp.ones((num_classes,), jnp.float32)
    if not isinstance(alpha, (list, tuple)):
        return jnp.full((num_classes,), float(alpha), jnp.float32)
    a = [float(v) for v in alpha]
    if len(a) == 1:
        a = a * num_classes
    elif len(a) != num_classes:
        a = a + [1.0] * (num_classes - len(a))
    return jnp.asarray(a[:num_classes], jnp.float32)


def focal_loss(pred, gt, alpha=None, *, max_tile_cols=4096,
               target_tile_elems=256 * 1024):
    """JAX/Pallas equivalent of FocalLoss(alpha)(pred, gt) — forward only."""
    B, C, H, W = pred.shape
    R, S = B * C, H * W
    alpha_vec = _alpha_vector(alpha, C)

    # ---- tiling -------------------------------------------------------
    S128 = _round_up(S, 128)
    tc = max(128, (min(max_tile_cols, S128) // 128) * 128)
    while S128 % tc != 0:          # largest 128-multiple divisor (<= 32 steps)
        tc -= 128
    TC = tc
    S_pad = S128

    R8 = _round_up(R, 8)
    TR = max(8, min(R8, (target_tile_elems // TC) // 8 * 8))
    R_pad = _round_up(R8, TR)
    NR, NC = R_pad // TR, S_pad // TC

    # ---- flatten / pad (zero padding contributes exactly 0 everywhere) --
    pred2d = pred.reshape(R, S)         # native dtype kept in HBM
    gt2d = gt.reshape(R, S)
    if (R_pad, S_pad) != (R, S):
        pred2d = jnp.pad(pred2d, ((0, R_pad - R), (0, S_pad - S)))
        gt2d = jnp.pad(gt2d, ((0, R_pad - R), (0, S_pad - S)))
    alpha_rows = jnp.tile(alpha_vec, (B,)).reshape(R, 1)
    if R_pad != R:
        alpha_rows = jnp.pad(alpha_rows, ((0, R_pad - R), (0, 0)),
                             constant_values=1.0)

    n = R_pad * S_pad
    in_bytes = (pred2d.size * pred2d.dtype.itemsize
                + gt2d.size * gt2d.dtype.itemsize)
    cost = pl.CostEstimate(flops=18 * n, transcendentals=n,
                           bytes_accessed=in_bytes + 3 * NR * 8 * 128 * 4)

    pos_p, neg_p, npos_p = pl.pallas_call(
        _focal_loss_kernel,
        grid_spec=pltpu.PrefetchScalarGridSpec(
            num_scalar_prefetch=0,
            grid=(NR, NC),
            in_specs=[
                pl.BlockSpec((TR, TC), lambda i, j: (i, j)),   # pred tile
                pl.BlockSpec((TR, TC), lambda i, j: (i, j)),   # gt tile
                pl.BlockSpec((TR, 1), lambda i, j: (i, 0)),    # per-row alpha
            ],
            out_specs=[
                pl.BlockSpec((1, 8, 128), lambda i, j: (i, 0, 0)),
                pl.BlockSpec((1, 8, 128), lambda i, j: (i, 0, 0)),
                pl.BlockSpec((1, 8, 128), lambda i, j: (i, 0, 0)),
            ],
        ),
        out_shape=(
            jax.ShapeDtypeStruct((NR, 8, 128), jnp.float32),
            jax.ShapeDtypeStruct((NR, 8, 128), jnp.float32),
            jax.ShapeDtypeStruct((NR, 8, 128), jnp.float32),
        ),
        compiler_params=pltpu.CompilerParams(
            dimension_semantics=("parallel", "arbitrary"),
            vmem_limit_bytes=32 * 1024 * 1024,
        ),
        cost_estimate=cost,
    )(pred2d, gt2d, alpha_rows)

    pos_sum = jnp.sum(pos_p)
    neg_sum = jnp.sum(neg_p)
    num_pos = jnp.sum(npos_p)
    # loss = -neg                       if num_pos == 0
    #      = -(pos + neg) / num_pos     otherwise
    return jnp.where(num_pos == 0.0, -neg_sum, -(pos_sum + neg_sum) / num_pos)


def _focal_loss_ref(pred, gt, alpha_vec):
    """Pure-JAX reference mirroring the PyTorch _neg_loss for validation."""
    pos_inds = (gt == 1.0).astype(jnp.float32)
    neg_inds = (gt < 1.0).astype(jnp.float32)
    neg_w = (1.0 - gt) ** 4
    pos_loss = jnp.log(pred) * (1.0 - pred) ** 2 * pos_inds
    neg_loss = jnp.log(1.0 - pred) * pred ** 2 * neg_w * neg_inds
    num_pos = pos_inds.sum()
    pos_loss = (alpha_vec[None, :, None, None] * pos_loss).sum()
    neg_loss = neg_loss.sum()
    return jnp.where(num_pos == 0.0, -neg_loss, -(pos_loss + neg_loss) / num_pos)


if __name__ == "__main__":
    key = jax.random.PRNGKey(0)
    k1, k2, k3, k4, k5, k6 = jax.random.split(key, 6)

    # ---- Test 1: small canonical shape (single tile) --------------------
    B, C, H, W = 2, 4, 16, 16
    pred = jax.nn.sigmoid(jax.random.normal(k1, (B, C, H, W), jnp.float32))
    pred = jnp.clip(pred, 1e-4, 1.0 - 1e-4)          # post-sigmoid, clamped like CenterNet
    gt = jax.random.uniform(k2, (B, C, H, W), jnp.float32, 0.0, 0.999)
    gt = jnp.where(jax.random.uniform(k3, (B, C, H, W)) < 0.02, 1.0, gt)
    alpha = 0.5
    loss = focal_loss(pred, gt, alpha)
    jax.block_until_ready(loss)
    ref = _focal_loss_ref(pred, gt, jnp.full((C,), alpha, jnp.float32))
    assert jnp.allclose(loss, ref, rtol=2e-4, atol=2e-4), (loss, ref)

    # ---- Test 2: non-divisible shape, multi-tile grid (padding + accum) --
    B, C, H, W = 3, 5, 16, 20                        # R=15 -> pad 16, S=320 -> pad 384
    pred = jax.nn.sigmoid(jax.random.normal(k4, (B, C, H, W), jnp.float32))
    pred = jnp.clip(pred, 1e-4, 1.0 - 1e-4)
    gt = jax.random.uniform(k5, (B, C, H, W), jnp.float32, 0.0, 0.999)
    gt = jnp.where(jax.random.uniform(k6, (B, C, H, W)) < 0.02, 1.0, gt)
    alpha_list = [0.25, 0.5, 1.0, 2.0, 0.75]
    loss2 = focal_loss(pred, gt, alpha_list,
                       max_tile_cols=128, target_tile_elems=1024)  # grid (2, 3)
    jax.block_until_ready(loss2)
    ref2 = _focal_loss_ref(pred, gt, jnp.asarray(alpha_list, jnp.float32))
    assert jnp.allclose(loss2, ref2, rtol=2e-4, atol=2e-4), (loss2, ref2)

    print("KERNEL_OK")
</pallas_src>

<mosaic_0001>
module attributes {stable_mosaic.version = 11 : i64} {
  func.func @_focal_loss_kernel(%arg0: i32, %arg1: i32, %arg2: memref<8x256xf32, #tpu.memory_space<vmem>>, %arg3: memref<8x256xf32, #tpu.memory_space<vmem>>, %arg4: memref<8x1xf32, #tpu.memory_space<vmem>>, %arg5: memref<1x8x128xf32, #tpu.memory_space<vmem>>, %arg6: memref<1x8x128xf32, #tpu.memory_space<vmem>>, %arg7: memref<1x8x128xf32, #tpu.memory_space<vmem>>) attributes {dimension_semantics = [#tpu.dimension_semantics<parallel>, #tpu.dimension_semantics<arbitrary>], iteration_bounds = array<i64: 1, 1>, scalar_prefetch = 0 : i64, scratch_operands = 0 : i64, tpu.core_type = #tpu.core_type<tc>, window_params = [{transform_indices = @transform_0, window_bounds = array<i64: 8, 256>}, {transform_indices = @transform_1, window_bounds = array<i64: 8, 256>}, {transform_indices = @transform_2, window_bounds = array<i64: 8, 1>}, {transform_indices = @transform_3, window_bounds = array<i64: 1, 8, 128>}, {transform_indices = @transform_4, window_bounds = array<i64: 1, 8, 128>}, {transform_indices = @transform_5, window_bounds = array<i64: 1, 8, 128>}]} {
    %c0_i32 = arith.constant 0 : i32
    %0 = arith.cmpi eq, %arg1, %c0_i32 : i32
    %1 = arith.extui %0 : i1 to i32
    %c0_i32_0 = arith.constant 0 : i32
    %2 = arith.cmpi ne, %1, %c0_i32_0 : i32
    scf.if %2 {
      %cst_29 = arith.constant 0.000000e+00 : f32
      %52 = vector.broadcast %cst_29 : f32 to vector<1x8x128xf32>
      %c0_30 = arith.constant 0 : index
      %c0_31 = arith.constant 0 : index
      %c0_32 = arith.constant 0 : index
      %53 = vector.load %arg5[%c0_30, %c0_31, %c0_32] : memref<1x8x128xf32, #tpu.memory_space<vmem>>, vector<1x8x128xf32>
      tpu.vector_store %arg5[%c0_30, %c0_31, %c0_32], %52 {strides = array<i32>} : memref<1x8x128xf32, #tpu.memory_space<vmem>>, vector<1x8x128xf32>,
      %cst_33 = arith.constant 0.000000e+00 : f32
      %54 = vector.broadcast %cst_33 : f32 to vector<1x8x128xf32>
      %c0_34 = arith.constant 0 : index
      %c0_35 = arith.constant 0 : index
      %c0_36 = arith.constant 0 : index
      %55 = vector.load %arg6[%c0_34, %c0_35, %c0_36] : memref<1x8x128xf32, #tpu.memory_space<vmem>>, vector<1x8x128xf32>
      tpu.vector_store %arg6[%c0_34, %c0_35, %c0_36], %54 {strides = array<i32>} : memref<1x8x128xf32, #tpu.memory_space<vmem>>, vector<1x8x128xf32>,
      %cst_37 = arith.constant 0.000000e+00 : f32
      %56 = vector.broadcast %cst_37 : f32 to vector<1x8x128xf32>
      %c0_38 = arith.constant 0 : index
      %c0_39 = arith.constant 0 : index
      %c0_40 = arith.constant 0 : index
      %57 = vector.load %arg7[%c0_38, %c0_39, %c0_40] : memref<1x8x128xf32, #tpu.memory_space<vmem>>, vector<1x8x128xf32>
      tpu.vector_store %arg7[%c0_38, %c0_39, %c0_40], %56 {strides = array<i32>} : memref<1x8x128xf32, #tpu.memory_space<vmem>>, vector<1x8x128xf32>,
    } else {
    }
    %c0 = arith.constant 0 : index
    %c0_1 = arith.constant 0 : index
    %3 = vector.load %arg2[%c0, %c0_1] : memref<8x256xf32, #tpu.memory_space<vmem>>, vector<8x256xf32>
    %c0_2 = arith.constant 0 : index
    %c0_3 = arith.constant 0 : index
    %4 = vector.load %arg3[%c0_2, %c0_3] : memref<8x256xf32, #tpu.memory_space<vmem>>, vector<8x256xf32>
    %c0_4 = arith.constant 0 : index
    %c0_5 = arith.constant 0 : index
    %5 = vector.load %arg4[%c0_4, %c0_5] : memref<8x1xf32, #tpu.memory_space<vmem>>, vector<8x1xf32>
    %cst = arith.constant 1.000000e+00 : f32
    %6 = vector.broadcast %cst : f32 to vector<8x256xf32>
    %7 = arith.cmpf oeq, %4, %6 : vector<8x256xf32>
    %8 = arith.extui %7 : vector<8x256xi1> to vector<8x256xi32>
    %9 = arith.sitofp %8 : vector<8x256xi32> to vector<8x256xf32>
    %cst_6 = arith.constant 1.000000e+00 : f32
    %10 = vector.broadcast %cst_6 : f32 to vector<8x256xf32>
    %11 = arith.subf %10, %4 : vector<8x256xf32>
    %12 = arith.mulf %11, %11 : vector<8x256xf32>
    %13 = arith.mulf %12, %12 : vector<8x256xf32>
    %cst_7 = arith.constant 1.000000e+00 : f32
    %14 = vector.broadcast %cst_7 : f32 to vector<8x256xf32>
    %15 = arith.subf %14, %3 : vector<8x256xf32>
    %16 = arith.select %7, %3, %15 : vector<8x256xi1>, vector<8x256xf32>
    %17 = math.log %16 : vector<8x256xf32>
    %18 = arith.mulf %15, %15 : vector<8x256xf32>
    %19 = arith.mulf %17, %18 : vector<8x256xf32>
    %cst_8 = arith.constant 0.000000e+00 : f32
    %20 = vector.broadcast %cst_8 : f32 to vector<8x256xf32>
    %21 = arith.select %7, %19, %20 : vector<8x256xi1>, vector<8x256xf32>
    %22 = vector.broadcast %5 : vector<8x1xf32> to vector<8x256xf32>
    %23 = arith.mulf %21, %22 : vector<8x256xf32>
    %24 = arith.mulf %3, %3 : vector<8x256xf32>
    %25 = arith.mulf %17, %24 : vector<8x256xf32>
    %26 = arith.mulf %25, %13 : vector<8x256xf32>
    %cst_9 = arith.constant 1.000000e+00 : f32
    %27 = vector.broadcast %cst_9 : f32 to vector<8x256xf32>
    %28 = arith.cmpf olt, %4, %27 : vector<8x256xf32>
    %cst_10 = arith.constant 0.000000e+00 : f32
    %29 = vector.broadcast %cst_10 : f32 to vector<8x256xf32>
    %30 = arith.select %28, %26, %29 : vector<8x256xi1>, vector<8x256xf32>
    %c0_11 = arith.constant 0 : index
    %c0_12 = arith.constant 0 : index
    %c0_13 = arith.constant 0 : index
    %31 = vector.load %arg5[%c0_11, %c0_12, %c0_13] : memref<1x8x128xf32, #tpu.memory_space<vmem>>, vector<1x8x128xf32>
    %32 = vector.extract_strided_slice %23 {offsets = [0, 0], sizes = [8, 128], strides = [1, 1]} : vector<8x256xf32> to vector<8x128xf32>
    %33 = vector.extract_strided_slice %23 {offsets = [0, 128], sizes = [8, 128], strides = [1, 1]} : vector<8x256xf32> to vector<8x128xf32>
    %34 = arith.addf %32, %33 : vector<8x128xf32>
    %35 = vector.shape_cast %34 : vector<8x128xf32> to vector<1x8x128xf32>
    %36 = arith.addf %31, %35 : vector<1x8x128xf32>
    %c0_14 = arith.constant 0 : index
    %c0_15 = arith.constant 0 : index
    %c0_16 = arith.constant 0 : index
    %37 = vector.load %arg5[%c0_14, %c0_15, %c0_16] : memref<1x8x128xf32, #tpu.memory_space<vmem>>, vector<1x8x128xf32>
    tpu.vector_store %arg5[%c0_14, %c0_15, %c0_16], %36 {strides = array<i32>} : memref<1x8x128xf32, #tpu.memory_space<vmem>>, vector<1x8x128xf32>,
    %c0_17 = arith.constant 0 : index
    %c0_18 = arith.constant 0 : index
    %c0_19 = arith.constant 0 : index
    %38 = vector.load %arg6[%c0_17, %c0_18, %c0_19] : memref<1x8x128xf32, #tpu.memory_space<vmem>>, vector<1x8x128xf32>
    %39 = vector.extract_strided_slice %30 {offsets = [0, 0], sizes = [8, 128], strides = [1, 1]} : vector<8x256xf32> to vector<8x128xf32>
    %40 = vector.extract_strided_slice %30 {offsets = [0, 128], sizes = [8, 128], strides = [1, 1]} : vector<8x256xf32> to vector<8x128xf32>
    %41 = arith.addf %39, %40 : vector<8x128xf32>
    %42 = vector.shape_cast %41 : vector<8x128xf32> to vector<1x8x128xf32>
    %43 = arith.addf %38, %42 : vector<1x8x128xf32>
    %c0_20 = arith.constant 0 : index
    %c0_21 = arith.constant 0 : index
    %c0_22 = arith.constant 0 : index
    %44 = vector.load %arg6[%c0_20, %c0_21, %c0_22] : memref<1x8x128xf32, #tpu.memory_space<vmem>>, vector<1x8x128xf32>
    tpu.vector_store %arg6[%c0_20, %c0_21, %c0_22], %43 {strides = array<i32>} : memref<1x8x128xf32, #tpu.memory_space<vmem>>, vector<1x8x128xf32>,
    %c0_23 = arith.constant 0 : index
    %c0_24 = arith.constant 0 : index
    %c0_25 = arith.constant 0 : index
    %45 = vector.load %arg7[%c0_23, %c0_24, %c0_25] : memref<1x8x128xf32, #tpu.memory_space<vmem>>, vector<1x8x128xf32>
    %46 = vector.extract_strided_slice %9 {offsets = [0, 0], sizes = [8, 128], strides = [1, 1]} : vector<8x256xf32> to vector<8x128xf32>
    %47 = vector.extract_strided_slice %9 {offsets = [0, 128], sizes = [8, 128], strides = [1, 1]} : vector<8x256xf32> to vector<8x128xf32>
    %48 = arith.addf %46, %47 : vector<8x128xf32>
    %49 = vector.shape_cast %48 : vector<8x128xf32> to vector<1x8x128xf32>
    %50 = arith.addf %45, %49 : vector<1x8x128xf32>
    %c0_26 = arith.constant 0 : index
    %c0_27 = arith.constant 0 : index
    %c0_28 = arith.constant 0 : index
    %51 = vector.load %arg7[%c0_26, %c0_27, %c0_28] : memref<1x8x128xf32, #tpu.memory_space<vmem>>, vector<1x8x128xf32>
    tpu.vector_store %arg7[%c0_26, %c0_27, %c0_28], %50 {strides = array<i32>} : memref<1x8x128xf32, #tpu.memory_space<vmem>>, vector<1x8x128xf32>,
    return
  }
  func.func @transform_0(%arg0: i32, %arg1: i32) -> (i32, i32) {
    %c0_i32 = arith.constant 0 : i32
    return %arg0, %arg1 : i32, i32
  }
  func.func @transform_1(%arg0: i32, %arg1: i32) -> (i32, i32) {
    %c0_i32 = arith.constant 0 : i32
    return %arg0, %arg1 : i32, i32
  }
  func.func @transform_2(%arg0: i32, %arg1: i32) -> (i32, i32) {
    %c0_i32 = arith.constant 0 : i32
    %c0_i32_0 = arith.constant 0 : i32
    return %arg0, %c0_i32 : i32, i32
  }
  func.func @transform_3(%arg0: i32, %arg1: i32) -> (i32, i32, i32) {
    %c0_i32 = arith.constant 0 : i32
    %c0_i32_0 = arith.constant 0 : i32
    %c0_i32_1 = arith.constant 0 : i32
    return %arg0, %c0_i32, %c0_i32_0 : i32, i32, i32
  }
  func.func @transform_4(%arg0: i32, %arg1: i32) -> (i32, i32, i32) {
    %c0_i32 = arith.constant 0 : i32
    %c0_i32_0 = arith.constant 0 : i32
    %c0_i32_1 = arith.constant 0 : i32
    return %arg0, %c0_i32, %c0_i32_0 : i32, i32, i32
  }
  func.func @transform_5(%arg0: i32, %arg1: i32) -> (i32, i32, i32) {
    %c0_i32 = arith.constant 0 : i32
    %c0_i32_0 = arith.constant 0 : i32
    %c0_i32_1 = arith.constant 0 : i32
    return %arg0, %c0_i32, %c0_i32_0 : i32, i32, i32
  }
}

</mosaic_0001>

<llo_original>
// kernel: tpu_custom_call.1
$region0: #{tpu_custom_call.1}
  #allocation0 [shape = 'u32[]', space=smem, size = 0x4, offset = 0x4, fixed_abs, tag = 'smem constant byte address 0x4 - core index']
  #allocation1 [shape = 'u32[144,128]{1,0:T(1,128)}', space=vmem, size = 0x12000, scoped, tag = 'internal scratch']
  %s0 = inlined_call_operand.hbm [shape: f32[8,256], index: 0, kind: input, shape index: {}]
  %s1 = inlined_call_operand.hbm [shape: f32[8,256], index: 1, kind: input, shape index: {}]
  %s2 = inlined_call_operand.vmem [shape: f32[8,1], index: 2, kind: input, shape index: {}]
  %s3 = inlined_call_operand.hbm [shape: f32[1,8,128], index: 3, kind: output, shape index: {0}]
  %s4 = inlined_call_operand.hbm [shape: f32[1,8,128], index: 4, kind: output, shape index: {1}]
  %s5 = inlined_call_operand.hbm [shape: f32[1,8,128], index: 5, kind: output, shape index: {2}]
  %6 = xla_tuple %s3, %s4, %s5
  %s7 = sld [smem:[#allocation0]]
  $region50: #{tpu_custom_call.1} parent=0
    _
  %s9 = ssub.s32 1, %s7
  %s10 = scalar_select 0, %s9, %s7
  $region1: #{tpu_custom_call.1} parent=0
    #allocation2 [shape = 'u8[8192]{0}', space=vmem, size = 0x2000, scoped, tag = 'input window, operand 0, single buffered']
    #allocation3 [shape = 's32[1]{0}', space=sflag, size = 0x4, scoped, tag = 'scoped memory for tpu_custom_call.1']
    #allocation4 [shape = 's32[1]{0}', space=sflag, size = 0x4, scoped, tag = 'scoped memory for tpu_custom_call.1']
    #allocation5 [shape = 'u8[8192]{0}', space=vmem, size = 0x2000, scoped, tag = 'input window, operand 1, single buffered']
    #allocation6 [shape = 's32[1]{0}', space=sflag, size = 0x4, scoped, tag = 'scoped memory for tpu_custom_call.1']
    #allocation7 [shape = 'u8[4096]{0}', space=vmem, size = 0x1000, scoped, tag = 'output window, operand 0, single buffered']
    #allocation8 [shape = 'u8[4096]{0}', space=vmem, size = 0x1000, scoped, tag = 'output window, operand 1, single buffered']
    #allocation9 [shape = 's32[1]{0}', space=sflag, size = 0x4, scoped, tag = 'scoped memory for tpu_custom_call.1']
    #allocation10 [shape = 'u8[4096]{0}', space=vmem, size = 0x1000, scoped, tag = 'output window, operand 2, single buffered']
    %11 = vsyncpa [#allocation3], 0
    %12 = vsyncpa [#allocation6], 0
    %13 = vsyncpa [#allocation4], 0
    %14 = vsyncpa [#allocation9], 0
    // Predicated region
    $region2: #{tpu_custom_call.1} parent=1 // pred_check
      _
    $region3: #{tpu_custom_call.1} parent=1 // pred_check_branch
      %16 = sbr.rel (0) target = $region5
    $region4: #{tpu_custom_call.1} parent=1 // pred_region
      %s18 = ssub.s32 256, 256
      %19 = vsyncadd [#allocation3], %s18
      %s21 = sshll.u32 [#allocation2], 4
      %s22 = int_to_ptr.vmem [resolvable:$true] %s21
      %24 = dma.hbm_to_vmem [thread:$0]  %s0, 256, %s22, [#allocation3]
    $region5: #{tpu_custom_call.1} parent=1 // pred_fallthru
      _
    // Predicated region
    $region6: #{tpu_custom_call.1} parent=1 // pred_check
      _
    $region7: #{tpu_custom_call.1} parent=1 // pred_check_branch
      %26 = sbr.rel (0) target = $region9
    $region8: #{tpu_custom_call.1} parent=1 // pred_region
      %s28 = ssub.s32 256, 256
      %29 = vsyncadd [#allocation6], %s28
      %s31 = sshll.u32 [#allocation5], 4
      %s32 = int_to_ptr.vmem [resolvable:$true] %s31
      %34 = dma.hbm_to_vmem [thread:$0]  %s1, 256, %s32, [#allocation6]
    $region9: #{tpu_custom_call.1} parent=1 // pred_fallthru
      _
    // Predicated region
    $region10: #{tpu_custom_call.1} parent=1 // pred_check
      _
    $region11: #{tpu_custom_call.1} parent=1 // pred_check_branch
      %36 = sbr.rel (0) target = $region13
    $region12: #{tpu_custom_call.1} parent=1 // pred_region
      _
    $region13: #{tpu_custom_call.1} parent=1 // pred_fallthru
      _
    // Predicated region
    $region14: #{tpu_custom_call.1} parent=1 // pred_check
      _
    $region15: #{tpu_custom_call.1} parent=1 // pred_check_branch
      %38 = sbr.rel (0) target = $region17
    $region16: #{tpu_custom_call.1} parent=1 // pred_region
      %39 = dma.done [#allocation3], 256
    $region17: #{tpu_custom_call.1} parent=1 // pred_fallthru
      _
    // Predicated region
    $region18: #{tpu_custom_call.1} parent=1 // pred_check
      _
    $region19: #{tpu_custom_call.1} parent=1 // pred_check_branch
      %41 = sbr.rel (0) target = $region21
    $region20: #{tpu_custom_call.1} parent=1 // pred_region
      %42 = dma.done [#allocation6], 256
    $region21: #{tpu_custom_call.1} parent=1 // pred_fallthru
      _
    %p43 = scmp.eq.s32.totalorder 0, 0
    // Predicated region
    $region22: #{tpu_custom_call.1} parent=1 // pred_check
      %p44 = pneg %p43
    $region23: #{tpu_custom_call.1} parent=1 // pred_check_branch
      %46 = sbr.rel (%p44) target = $region25
    $region24: #{tpu_custom_call.1} parent=1 // pred_region
      %47 = vst [vmem:[#allocation7] sm:$0xff] 0.0
      %48 = vst [vmem:[#allocation8] sm:$0xff] 0.0
      %49 = vst [vmem:[#allocation10] sm:$0xff] 0.0
    $region25: #{tpu_custom_call.1} parent=1 // pred_fallthru
      _
    %v50 = vld [vmem:[#allocation2] sm:$0xff]
    %v51 = vld [vmem:[#allocation2 + $0x8] sm:$0xff]
    %v52 = vld [vmem:[#allocation5] sm:$0xff]
    %v53 = vld [vmem:[#allocation5 + $0x8] sm:$0xff]
    %v54 = vld [vmem:[%s2] sm:$0xff]
    %vm55 = vcmp.eq.f32.partialorder %v52, 1.0
    %vm56 = vcmp.eq.f32.partialorder %v53, 1.0
    %v57 = vsel %vm55, 1, 0
    %v58 = vsel %vm56, 1, 0
    %v59 = vcvt.s32.f32 %v57
    %v60 = vcvt.s32.f32 %v58
    %v61 = vsub.f32 1.0, %v52
    %v62 = vsub.f32 1.0, %v53
    %v63 = vmul.f32 %v61, %v61
    %v64 = vmul.f32 %v62, %v62
    %v65 = vmul.f32 %v63, %v63
    %v66 = vmul.f32 %v64, %v64
    %v67 = vsub.f32 1.0, %v50
    %v68 = vsub.f32 1.0, %v51
    %v69 = vsel %vm55, %v50, %v67
    %v70 = vsel %vm56, %v51, %v68
    %v71 = vlog2.pop %v69
    %v72 = vmul.f32 %v71, 0.6931472
    %v73 = vlog2.pop %v70
    %v74 = vmul.f32 %v73, 0.6931472
    %v75 = vmul.f32 %v67, %v67
    %v76 = vmul.f32 %v68, %v68
    %v77 = vmul.f32 %v72, %v75
    %v78 = vmul.f32 %v74, %v76
    %v79 = vsel %vm55, %v77, 0.0
    %v80 = vsel %vm56, %v78, 0.0
    %82 = vset.pattern.permute.xlu0 0
    %83 = vperm.xlu0 %82, %v54
    %v84 = vpop.permute.xlu0 %83
    %v86 = vmul.f32 %v79, %v84
    %v87 = vmul.f32 %v80, %v84
    %v88 = vmul.f32 %v50, %v50
    %v89 = vmul.f32 %v51, %v51
    %v90 = vmul.f32 %v72, %v88
    %v91 = vmul.f32 %v74, %v89
    %v92 = vmul.f32 %v90, %v65
    %v93 = vmul.f32 %v91, %v66
    %vm94 = vcmp.lt.f32.partialorder %v52, 1.0
    %vm95 = vcmp.lt.f32.partialorder %v53, 1.0
    %v96 = vsel %vm94, %v92, 0.0
    %v97 = vsel %vm95, %v93, 0.0
    %v98 = vld [vmem:[#allocation7] sm:$0xff]
    %v99 = vadd.f32 %v86, %v87
    %v100 = vadd.f32 %v98, %v99
    %101 = vst [vmem:[#allocation7] sm:$0xff] %v100
    %v102 = vld [vmem:[#allocation8] sm:$0xff]
    %v103 = vadd.f32 %v96, %v97
    %v104 = vadd.f32 %v102, %v103
    %105 = vst [vmem:[#allocation8] sm:$0xff] %v104
    %v106 = vld [vmem:[#allocation10] sm:$0xff]
    %v107 = vadd.f32 %v59, %v60
    %v108 = vadd.f32 %v106, %v107
    %109 = vst [vmem:[#allocation10] sm:$0xff] %v108
    // Predicated region
    $region26: #{tpu_custom_call.1} parent=1 // pred_check
      _
    $region27: #{tpu_custom_call.1} parent=1 // pred_check_branch
      %111 = sbr.rel (0) target = $region29
    $region28: #{tpu_custom_call.1} parent=1 // pred_region
      %s113 = ssub.s32 128, 128
      %114 = vsyncadd [#allocation4], %s113
      %s116 = sshll.u32 [#allocation7], 4
      %s117 = int_to_ptr.vmem [resolvable:$true] %s116
      %119 = dma.vmem_to_hbm [thread:$0]  %s117, 128, %s3, [#allocation4]
    $region29: #{tpu_custom_call.1} parent=1 // pred_fallthru
      _
    // Predicated region
    $region30: #{tpu_custom_call.1} parent=1 // pred_check
      _
    $region31: #{tpu_custom_call.1} parent=1 // pred_check_branch
      %121 = sbr.rel (0) target = $region33
    $region32: #{tpu_custom_call.1} parent=1 // pred_region
      %s123 = ssub.s32 128, 128
      %124 = vsyncadd [#allocation9], %s123
      %s126 = sshll.u32 [#allocation8], 4
      %s127 = int_to_ptr.vmem [resolvable:$true] %s126
      %129 = dma.vmem_to_hbm [thread:$0]  %s127, 128, %s4, [#allocation9]
    $region33: #{tpu_custom_call.1} parent=1 // pred_fallthru
      _
    // Predicated region
    $region34: #{tpu_custom_call.1} parent=1 // pred_check
      _
    $region35: #{tpu_custom_call.1} parent=1 // pred_check_branch
      %131 = sbr.rel (0) target = $region37
    $region36: #{tpu_custom_call.1} parent=1 // pred_region
      %s133 = ssub.s32 128, 128
      %134 = vsyncadd [#allocation9], %s133
      %s136 = sshll.u32 [#allocation10], 4
      %s137 = int_to_ptr.vmem [resolvable:$true] %s136
      %139 = dma.vmem_to_hbm [thread:$0]  %s137, 128, %s5, [#allocation9]
    $region37: #{tpu_custom_call.1} parent=1 // pred_fallthru
      _
    // Predicated region
    $region38: #{tpu_custom_call.1} parent=1 // pred_check
      _
    $region39: #{tpu_custom_call.1} parent=1 // pred_check_branch
      %141 = sbr.rel (0) target = $region41
    $region40: #{tpu_custom_call.1} parent=1 // pred_region
      %142 = dma.done [#allocation4], 128
    $region41: #{tpu_custom_call.1} parent=1 // pred_fallthru
      _
    // Predicated region
    $region42: #{tpu_custom_call.1} parent=1 // pred_check
      _
    $region43: #{tpu_custom_call.1} parent=1 // pred_check_branch
      %144 = sbr.rel (0) target = $region45
    $region44: #{tpu_custom_call.1} parent=1 // pred_region
      %145 = dma.done [#allocation9], 128
    $region45: #{tpu_custom_call.1} parent=1 // pred_fallthru
      _
    // Predicated region
    $region46: #{tpu_custom_call.1} parent=1 // pred_check
      _
    $region47: #{tpu_custom_call.1} parent=1 // pred_check_branch
      %147 = sbr.rel (0) target = $region49
    $region48: #{tpu_custom_call.1} parent=1 // pred_region
      %148 = dma.done [#allocation9], 128
    $region49: #{tpu_custom_call.1} parent=1 // pred_fallthru
      _
    %149 = vsyncpa [#allocation3], 1
    %150 = vsyncpa [#allocation6], 1
    %151 = vsyncpa [#allocation4], 1
    %152 = vsyncpa [#allocation9], 1

</llo_original>
